<compile_context>
chip_gen: v6e
topology: v6e:2x2x1
jax: 0.10.0
libtpu: 0.0.40
codegen_flags: <defaults>
</compile_context>

<pallas_src>
import functools

import jax
import jax.numpy as jnp
from jax.experimental import pallas as pl
from jax.experimental.pallas import tpu as pltpu

FEAT_DIM = 144            # 6 * 24
COND_DIM = 2048
HALF = FEAT_DIM // 2      # 72
HALF_PAD = 128            # lane-padded half width used inside the flow math
FLOW_HIDDEN = 256
N_FLOWS = 4
HEAD_HIDDEN = 1024
HEAD_OUT = 13             # 10 shape + 3 cam
HEAD_N_PAD = 128
CONV_CH = 32              # conv-stem output channels
CONV_N_PAD = 128          # lane-padded conv-stem channel width


# ----------------------------------------------------------------------------
# Shared in-kernel flow math (pure functions over loaded values / weight refs)
# ----------------------------------------------------------------------------
def _coupling(z1, z2, cp, w1z, w2st, b2st, reverse):
    """One conditional affine coupling on lane-padded halves.

    h = relu(z1 @ W1z + cond_proj)
    s|t = h @ [W2s | W2t] + [b2s | b2t]        (single 256-wide MXU matmul)
    fwd: z2' = z2 * exp(s) + t;   rev: z2' = (z2 - t) * exp(-s)
    Padded columns are zero everywhere so they stay zero and add 0 to log-det.
    """
    h = jnp.maximum(
        jnp.dot(z1.astype(w1z.dtype), w1z,
                preferred_element_type=jnp.float32) + cp, 0.0)
    st = jnp.dot(h.astype(w2st.dtype), w2st,
                 preferred_element_type=jnp.float32) + b2st
    s = jnp.tanh(st[:, :HALF_PAD])
    t = st[:, HALF_PAD:]
    if reverse:
        return (z2 - t) * jnp.exp(-s), s
    return z2 * jnp.exp(s) + t, s


def _flow_stack(zA, zB, cond, w1z_ref, w2st_ref, b2st_ref, reverse):
    """All 4 coupling blocks, statically unrolled; returns halves + log_det."""
    ld = jnp.zeros((zA.shape[0], 1), jnp.float32)
    order = range(N_FLOWS - 1, -1, -1) if reverse else range(N_FLOWS)
    for i in order:
        flip = bool(i % 2)
        z1, z2 = (zB, zA) if flip else (zA, zB)
        cp = cond[:, i * FLOW_HIDDEN:(i + 1) * FLOW_HIDDEN]
        out2, s = _coupling(z1, z2, cp, w1z_ref[i], w2st_ref[i], b2st_ref[i],
                            reverse)
        ld = ld + jnp.sum(s, axis=-1, keepdims=True)
        if flip:
            zA = out2
        else:
            zB = out2
    return zA, zB, (-ld if reverse else ld)


# ----------------------------------------------------------------------------
# Pallas kernels
# ----------------------------------------------------------------------------
def _encoder_kernel(cols_ref, wconv_ref, bconv_ref, o_ref, acc_ref, *, inv_hw):
    """conv(3x3 as im2col matmul, unpadded K) + ReLU + GAP; grid=(B, n_sp)."""
    sp = pl.program_id(1)

    @pl.when(sp == 0)
    def _():
        acc_ref[...] = jnp.zeros_like(acc_ref)

    conv = jnp.dot(cols_ref[...], wconv_ref[...],
                   preferred_element_type=jnp.float32)
    conv = jnp.maximum(conv + bconv_ref[...], 0.0)          # (tile, 128) f32

    tile = conv.shape[0]
    if tile % 8 == 0:
        # Cross-vreg VPU adds into an 8-sublane partial accumulator.
        acc_ref[...] += conv.reshape(tile // 8, 8, CONV_N_PAD).sum(axis=0)
    else:
        acc_ref[0:1, :] += jnp.sum(conv, axis=0, keepdims=True)

    @pl.when(sp == pl.num_programs(1) - 1)
    def _():
        gap = jnp.sum(acc_ref[...], axis=0, keepdims=True) * inv_hw
        o_ref[...] = gap[None].astype(o_ref.dtype)


def _postnet_kernel(gap_ref, poseA_ref, poseB_ref,
                    wfc_ref, bfc_ref, wbig_ref, bbig_ref,
                    hw2_ref, hb2_ref,
                    w1z_ref, w2st_ref, b2st_ref,
                    z_ref, ld_ref, head_ref, mode_ref, cond_ref):
    """Whole post-encoder network in one launch.

    GAP -> img_feats (2048) -> [cond-proj | head-hidden] (one 2048x2048 matmul)
    -> head output, forward flow pass (pose -> z, log_det) and reverse flow
    pass (zeros -> conditional mode pose), all with VMEM-resident weights.
    """
    # Encoder FC: pooled conv features (B,128) bf16 @ (128,2048).
    feats = jnp.dot(gap_ref[...], wfc_ref[...],
                    preferred_element_type=jnp.float32) + bfc_ref[...]
    feats_b = feats.astype(wbig_ref.dtype)

    # Merged cond-projection (cols 0:1024) | head hidden (cols 1024:2048).
    big = jnp.dot(feats_b, wbig_ref[...],
                  preferred_element_type=jnp.float32) + bbig_ref[...]
    cond = big[:, :N_FLOWS * FLOW_HIDDEN]                    # (B, 1024)
    head_h = jnp.maximum(big[:, N_FLOWS * FLOW_HIDDEN:], 0.0)

    head_ref[...] = (jnp.dot(head_h.astype(hw2_ref.dtype), hw2_ref[...],
                             preferred_element_type=jnp.float32)
                     + hb2_ref[...]).astype(head_ref.dtype)
    cond_ref[...] = cond.astype(cond_ref.dtype)

    # Forward pass: pose -> latent z + log_det (all 4 blocks fused).
    zA, zB, ld = _flow_stack(poseA_ref[...], poseB_ref[...], cond,
                             w1z_ref, w2st_ref, b2st_ref, reverse=False)
    z_ref[...] = jnp.concatenate([zA, zB], axis=-1)
    ld_ref[...] = jnp.broadcast_to(ld, ld_ref.shape)         # lane-dense

    # Reverse pass from zeros: conditional mode pose (all 4 blocks fused).
    zeros = jnp.zeros_like(zA)
    rA, rB, _ = _flow_stack(zeros, zeros, cond,
                            w1z_ref, w2st_ref, b2st_ref, reverse=True)
    mode_ref[...] = jnp.concatenate([rA, rB], axis=-1)


def _samples_rev_kernel(zA_ref, zB_ref, cond_ref,
                        w1z_ref, w2st_ref, b2st_ref, out_ref):
    """Fused 4-block reverse pass for the samples of ONE batch row.

    grid=(B,); the (1,1024) cond block for this batch row broadcasts over the
    (n_samples-1) sample rows, so the conditioning is never materialized
    B*(n_samples-1) times in HBM.
    """
    rA, rB, _ = _flow_stack(zA_ref[...], zB_ref[...], cond_ref[...],
                            w1z_ref, w2st_ref, b2st_ref, reverse=True)
    out_ref[...] = jnp.concatenate([rA, rB], axis=-1)


# ----------------------------------------------------------------------------
# Kernel wrappers
# ----------------------------------------------------------------------------
def _pick_spatial_tile(hw, cap=4096):
    """Largest multiple-of-8 tile <= cap that evenly divides hw."""
    if hw <= cap:
        return hw
    for t in range(cap - cap % 8, 7, -8):
        if hw % t == 0:
            return t
    # TODO(synk): emit a remainder tile for resolutions nothing divides.
    return hw


def encoder_forward(img, p):
    """img: (B, C, H, W) NCHW -> pooled conv features (B, 128) bf16."""
    B, C, H, W = img.shape
    HW = H * W
    x = jnp.transpose(img, (0, 2, 3, 1))                  # NHWC
    xp = jnp.pad(x, ((0, 0), (1, 1), (1, 1), (0, 0)))     # 3x3, pad=1, stride=1
    patches = [xp[:, dh:dh + H, dw:dw + W, :]
               for dh in range(3) for dw in range(3)]
    # Unpadded K = 9*C (full-extent last dim), bf16: minimal HBM traffic.
    cols = jnp.concatenate(patches, axis=-1).reshape(B, HW, 9 * C)
    cols = cols.astype(jnp.bfloat16)

    tile = _pick_spatial_tile(HW)
    grid = (B, HW // tile)

    gap = pl.pallas_call(
        functools.partial(_encoder_kernel, inv_hw=1.0 / float(HW)),
        out_shape=jax.ShapeDtypeStruct((B, 1, CONV_N_PAD), jnp.bfloat16),
        grid_spec=pltpu.PrefetchScalarGridSpec(
            num_scalar_prefetch=0,
            grid=grid,
            in_specs=[
                pl.BlockSpec((None, tile, 9 * C), lambda b, s: (b, s, 0)),
                pl.BlockSpec((9 * C, CONV_N_PAD), lambda b, s: (0, 0)),
                pl.BlockSpec((1, CONV_N_PAD), lambda b, s: (0, 0)),
            ],
            out_specs=pl.BlockSpec((1, 1, CONV_N_PAD), lambda b, s: (b, 0, 0)),
            scratch_shapes=[pltpu.VMEM((8, CONV_N_PAD), jnp.float32)],
        ),
        compiler_params=pltpu.CompilerParams(
            dimension_semantics=("parallel", "arbitrary")),
    )(cols, p["Wconv"], p["bconv"])
    return gap[:, 0, :]                                    # (B, 128) bf16


def postnet_apply(gap, poseA, poseB, params):
    """One fused launch for the whole post-encoder network."""
    B = gap.shape[0]
    hp = params["head"]
    out_shapes = (
        jax.ShapeDtypeStruct((B, 2 * HALF_PAD), jnp.float32),            # z halves
        jax.ShapeDtypeStruct((B, HALF_PAD), jnp.float32),                # log_det (lane-dense)
        jax.ShapeDtypeStruct((B, HEAD_N_PAD), jnp.float32),              # head output
        jax.ShapeDtypeStruct((B, 2 * HALF_PAD), jnp.float32),            # mode pose halves
        jax.ShapeDtypeStruct((B, N_FLOWS * FLOW_HIDDEN), jnp.float32),   # cond projections
    )
    return pl.pallas_call(
        _postnet_kernel,
        out_shape=out_shapes,
        compiler_params=pltpu.CompilerParams(
            vmem_limit_bytes=48 * 1024 * 1024),
    )(gap, poseA, poseB,
      params["Wfc"], params["bfc"], params["Wbig"], params["bbig"],
      hp["W2"], hp["b2"],
      params["W1z"], params["W2st"], params["b2st"])


def samples_reverse(samples_flat, cond, params, B, S):
    """Reverse flow over samples, gridded over batch so cond is read once/row."""
    sA = _pad_half(samples_flat[:, :HALF]).reshape(B, S, HALF_PAD)
    sB = _pad_half(samples_flat[:, HALF:]).reshape(B, S, HALF_PAD)
    cond3 = cond[:, None, :]                               # (B, 1, 1024)

    out = pl.pallas_call(
        _samples_rev_kernel,
        out_shape=jax.ShapeDtypeStruct((B, S, 2 * HALF_PAD), jnp.float32),
        grid_spec=pltpu.PrefetchScalarGridSpec(
            num_scalar_prefetch=0,
            grid=(B,),
            in_specs=[
                pl.BlockSpec((None, S, HALF_PAD), lambda b: (b, 0, 0)),
                pl.BlockSpec((None, S, HALF_PAD), lambda b: (b, 0, 0)),
                pl.BlockSpec((None, 1, N_FLOWS * FLOW_HIDDEN),
                             lambda b: (b, 0, 0)),
                pl.BlockSpec((N_FLOWS, HALF_PAD, FLOW_HIDDEN),
                             lambda b: (0, 0, 0)),
                pl.BlockSpec((N_FLOWS, FLOW_HIDDEN, 2 * HALF_PAD),
                             lambda b: (0, 0, 0)),
                pl.BlockSpec((N_FLOWS, 1, 2 * HALF_PAD), lambda b: (0, 0, 0)),
            ],
            out_specs=pl.BlockSpec((None, S, 2 * HALF_PAD),
                                   lambda b: (b, 0, 0)),
        ),
        compiler_params=pltpu.CompilerParams(
            dimension_semantics=("parallel",)),
    )(sA, sB, cond3, params["W1z"], params["W2st"], params["b2st"])

    out = out.reshape(B * S, 2 * HALF_PAD)
    return jnp.concatenate(
        [out[:, :HALF], out[:, HALF_PAD:HALF_PAD + HALF]], axis=1)


# ----------------------------------------------------------------------------
# Model forward (glue in plain JAX, compute in Pallas)
# ----------------------------------------------------------------------------
def _pad_half(x):
    return jnp.pad(x, ((0, 0), (0, HALF_PAD - HALF)))


def prohmr_forward(img, pose, params, n_samples=1, key=None):
    B = img.shape[0]
    gap = encoder_forward(img, params["encoder"])             # (B, 128) bf16

    poseA = _pad_half(pose[:, :HALF])
    poseB = _pad_half(pose[:, HALF:])

    z_pad, ld_pad, head_out, mode_pad, cond = postnet_apply(
        gap, poseA, poseB, params)

    z = jnp.concatenate(
        [z_pad[:, :HALF], z_pad[:, HALF_PAD:HALF_PAD + HALF]], axis=1)
    log_det = ld_pad[:, 0]
    mode_pose = jnp.concatenate(
        [mode_pad[:, :HALF], mode_pad[:, HALF_PAD:HALF_PAD + HALF]], axis=1)

    offset_shape = head_out[:, :10]
    offset_cam = head_out[:, 10:HEAD_OUT]
    # Matches the reference module exactly: cam_mean = theta_mean[:, -3] is a
    # single scalar broadcast over the 3 camera components.
    cam = params["cam_mean"] + offset_cam
    shape = params["shape_mean"] + offset_shape

    samples = None
    if n_samples > 1:
        key = jax.random.PRNGKey(42) if key is None else key
        S = n_samples - 1
        samp0 = jax.random.normal(key, (B * S, FEAT_DIM), jnp.float32)
        samples = samples_reverse(samp0, cond, params, B, S)

    return z, log_det, cam, shape, mode_pose, samples


# ----------------------------------------------------------------------------
# Deterministic parameter init (synthetic; pre-padded / fused / bf16 weights)
# ----------------------------------------------------------------------------
def init_params(key, in_ch):
    def dense(k, fan_in, fan_out, scale=None):
        scale = scale if scale is not None else 1.0 / float(fan_in) ** 0.5
        w = scale * jax.random.normal(k, (fan_in, fan_out), jnp.float32)
        b = jnp.zeros((fan_out,), jnp.float32)
        return w, b

    def pad2(x, rows, cols):
        return jnp.pad(x, ((0, rows - x.shape[0]), (0, cols - x.shape[1])))

    keys = jax.random.split(key, 16)
    params = {}

    # Encoder conv stem (3x3, in_ch -> 32); FC (32 -> 2048) lives in the fused
    # post-encoder kernel. Only the output-channel dim is lane-padded.
    Wconv, bconv = dense(keys[0], 9 * in_ch, CONV_CH)
    Wfc, bfc = dense(keys[1], CONV_CH, COND_DIM)
    params["encoder"] = {
        "Wconv": jnp.pad(Wconv, ((0, 0), (0, CONV_N_PAD - CONV_CH))
                         ).astype(jnp.bfloat16),
        "bconv": pad2(bconv[None, :], 1, CONV_N_PAD),
    }
    params["Wfc"] = pad2(Wfc, CONV_N_PAD, COND_DIM).astype(jnp.bfloat16)
    params["bfc"] = bfc[None, :]

    # Flow blocks: W1 split into the z1 part (lane-padded, stacked over blocks)
    # and the cond part (stacked into one 2048x1024 matrix, merged with the
    # head W1 below); W2's s/t halves are fused into one 256-wide weight.
    w1z_list, w2st_list, b2st_list, wc_list, bc_list = [], [], [], [], []
    for i in range(N_FLOWS):
        W1, b1 = dense(keys[2 + 2 * i], HALF + COND_DIM, FLOW_HIDDEN)
        W2, b2 = dense(keys[3 + 2 * i], FLOW_HIDDEN, FEAT_DIM, scale=0.01)
        wc_list.append(W1[HALF:])                         # (2048, 256)
        bc_list.append(b1[None, :])                       # (1, 256)
        w1z_list.append(pad2(W1[:HALF], HALF_PAD, FLOW_HIDDEN))
        w2st_list.append(jnp.concatenate(
            [pad2(W2[:, :HALF], FLOW_HIDDEN, HALF_PAD),
             pad2(W2[:, HALF:], FLOW_HIDDEN, HALF_PAD)], axis=1))
        b2st_list.append(jnp.concatenate(
            [pad2(b2[None, :HALF], 1, HALF_PAD),
             pad2(b2[None, HALF:], 1, HALF_PAD)], axis=1))
    params["W1z"] = jnp.stack(w1z_list).astype(jnp.bfloat16)    # (4,128,256)
    params["W2st"] = jnp.stack(w2st_list).astype(jnp.bfloat16)  # (4,256,256)
    params["b2st"] = jnp.stack(b2st_list)                       # (4,1,256)
    flow_Wc = jnp.concatenate(wc_list, axis=1)                  # (2048, 1024)
    flow_bc = jnp.concatenate(bc_list, axis=1)                  # (1, 1024)

    # Head: 2048 -> 1024 (ReLU) -> 13; its first matmul is merged with the
    # cond-projection into one (2048, 2048) weight.
    HW1, Hb1 = dense(keys[10], COND_DIM, HEAD_HIDDEN)
    HW2, Hb2 = dense(keys[11], HEAD_HIDDEN, HEAD_OUT, scale=0.02)
    params["Wbig"] = jnp.concatenate([flow_Wc, HW1], axis=1).astype(jnp.bfloat16)
    params["bbig"] = jnp.concatenate([flow_bc, Hb1[None, :]], axis=1)
    params["head"] = {
        "W2": pad2(HW2, HEAD_HIDDEN, HEAD_N_PAD).astype(jnp.bfloat16),
        "b2": pad2(Hb2[None, :], 1, HEAD_N_PAD),
    }

    # Synthetic SMPL mean parameters (144 pose + 10 shape + 3 cam = 157).
    theta_mean = (0.01 * jnp.arange(157, dtype=jnp.float32))[None, :]
    params["theta_mean"] = theta_mean
    params["cam_mean"] = theta_mean[:, -3]          # (1,), as in the reference
    params["shape_mean"] = theta_mean[:, -13:-3]    # (1, 10)
    return params


# ----------------------------------------------------------------------------
if __name__ == "__main__":
    B, C, H, W = 2, 4, 16, 16
    key = jax.random.PRNGKey(0)
    k_img, k_pose, k_par = jax.random.split(key, 3)

    img = jax.random.normal(k_img, (B, C, H, W), jnp.float32)
    pose = jax.random.normal(k_pose, (B, FEAT_DIM), jnp.float32)
    params = init_params(k_par, C)

    # n_samples = 1 path (mode pose only).
    z, log_det, cam, shape, mode_pose, samples = prohmr_forward(
        img, pose, params, n_samples=1)
    jax.block_until_ready((z, log_det, cam, shape, mode_pose))
    assert z.shape == (B, FEAT_DIM)
    assert log_det.shape == (B,)
    assert cam.shape == (B, 3)
    assert shape.shape == (B, 10)
    assert mode_pose.shape == (B, FEAT_DIM)
    assert samples is None

    # n_samples > 1 exercises the per-batch-gridded samples reverse kernel.
    _, _, _, _, _, samples3 = prohmr_forward(img, pose, params, n_samples=3)
    jax.block_until_ready(samples3)
    assert samples3.shape == (B * 2, FEAT_DIM)

    print("KERNEL_OK")
</pallas_src>

<mosaic_0001>
module attributes {stable_mosaic.version = 11 : i64} {
  func.func @_encoder_kernel(%arg0: i32, %arg1: i32, %arg2: memref<1x256x36xbf16, #tpu.memory_space<vmem>>, %arg3: memref<36x128xbf16, #tpu.memory_space<vmem>>, %arg4: memref<1x128xf32, #tpu.memory_space<vmem>>, %arg5: memref<1x1x128xbf16, #tpu.memory_space<vmem>>, %arg6: memref<8x128xf32, #tpu.memory_space<vmem>>) attributes {dimension_semantics = [#tpu.dimension_semantics<parallel>, #tpu.dimension_semantics<arbitrary>], iteration_bounds = array<i64: 2, 1>, scalar_prefetch = 0 : i64, scratch_operands = 1 : i64, tpu.core_type = #tpu.core_type<tc>, window_params = [{transform_indices = @transform_0, window_bounds = array<i64: 1, 256, 36>}, {pipeline_mode = #tpu.pipeline_mode<synchronous>, transform_indices = @transform_1, window_bounds = array<i64: 36, 128>}, {pipeline_mode = #tpu.pipeline_mode<synchronous>, transform_indices = @transform_2, window_bounds = array<i64: 1, 128>}, {transform_indices = @transform_3, window_bounds = array<i64: 1, 1, 128>}]} {
    %c0_i32 = arith.constant 0 : i32
    %0 = arith.cmpi eq, %arg1, %c0_i32 : i32
    %1 = arith.extui %0 : i1 to i32
    %c0_i32_0 = arith.constant 0 : i32
    %2 = arith.cmpi ne, %1, %c0_i32_0 : i32
    scf.if %2 {
      %cst_15 = arith.constant 0.000000e+00 : f32
      %20 = vector.broadcast %cst_15 : f32 to vector<8x128xf32>
      %c0_16 = arith.constant 0 : index
      %c0_17 = arith.constant 0 : index
      %21 = vector.load %arg6[%c0_16, %c0_17] : memref<8x128xf32, #tpu.memory_space<vmem>>, vector<8x128xf32>
      tpu.vector_store %arg6[%c0_16, %c0_17], %20 {strides = array<i32>} : memref<8x128xf32, #tpu.memory_space<vmem>>, vector<8x128xf32>,
    } else {
    }
    %c0 = arith.constant 0 : index
    %c0_1 = arith.constant 0 : index
    %c0_2 = arith.constant 0 : index
    %3 = vector.load %arg2[%c0, %c0_1, %c0_2] : memref<1x256x36xbf16, #tpu.memory_space<vmem>>, vector<1x256x36xbf16>
    %4 = vector.shape_cast %3 : vector<1x256x36xbf16> to vector<256x36xbf16>
    %c0_3 = arith.constant 0 : index
    %c0_4 = arith.constant 0 : index
    %5 = vector.load %arg3[%c0_3, %c0_4] : memref<36x128xbf16, #tpu.memory_space<vmem>>, vector<36x128xbf16>
    %cst = arith.constant dense<0.000000e+00> : vector<256x128xf32>
    %6 = tpu.matmul %4, %5, %cst {dimension_numbers = #tpu.dot_dimension_numbers<[1], [0], [0], [1], [0, 0, 1, 1], [], []>} : vector<256x36xbf16>, vector<36x128xbf16>, vector<256x128xf32> -> vector<256x128xf32>
    %c0_5 = arith.constant 0 : index
    %c0_6 = arith.constant 0 : index
    %7 = vector.load %arg4[%c0_5, %c0_6] : memref<1x128xf32, #tpu.memory_space<vmem>>, vector<1x128xf32>
    %8 = vector.broadcast %7 : vector<1x128xf32> to vector<256x128xf32>
    %9 = arith.addf %6, %8 : vector<256x128xf32>
    %cst_7 = arith.constant 0.000000e+00 : f32
    %10 = vector.broadcast %cst_7 : f32 to vector<256x128xf32>
    %11 = arith.maximumf %9, %10 : vector<256x128xf32>
    %c0_8 = arith.constant 0 : index
    %c0_9 = arith.constant 0 : index
    %12 = vector.load %arg6[%c0_8, %c0_9] : memref<8x128xf32, #tpu.memory_space<vmem>>, vector<8x128xf32>
    %13 = vector.shape_cast %11 : vector<256x128xf32> to vector<32x8x128xf32>
    %cst_10 = arith.constant dense<0.000000e+00> : vector<8x128xf32>
    %14 = vector.multi_reduction <add>, %13, %cst_10 [0] : vector<32x8x128xf32> to vector<8x128xf32>
    %15 = arith.addf %12, %14 : vector<8x128xf32>
    %c0_11 = arith.constant 0 : index
    %c0_12 = arith.constant 0 : index
    %16 = vector.load %arg6[%c0_11, %c0_12] : memref<8x128xf32, #tpu.memory_space<vmem>>, vector<8x128xf32>
    tpu.vector_store %arg6[%c0_11, %c0_12], %15 {strides = array<i32>} : memref<8x128xf32, #tpu.memory_space<vmem>>, vector<8x128xf32>,
    %c0_i32_13 = arith.constant 0 : i32
    %17 = arith.cmpi eq, %arg1, %c0_i32_13 : i32
    %18 = arith.extui %17 : i1 to i32
    %c0_i32_14 = arith.constant 0 : i32
    %19 = arith.cmpi ne, %18, %c0_i32_14 : i32
    scf.if %19 {
      %c0_15 = arith.constant 0 : index
      %c0_16 = arith.constant 0 : index
      %20 = vector.load %arg6[%c0_15, %c0_16] : memref<8x128xf32, #tpu.memory_space<vmem>>, vector<8x128xf32>
      %cst_17 = arith.constant dense<0.000000e+00> : vector<128xf32>
      %21 = vector.multi_reduction <add>, %20, %cst_17 [0] : vector<8x128xf32> to vector<128xf32>
      %22 = vector.shape_cast %21 : vector<128xf32> to vector<1x128xf32>
      %cst_18 = arith.constant 3.906250e-03 : f32
      %23 = vector.broadcast %cst_18 : f32 to vector<1x128xf32>
      %24 = arith.mulf %22, %23 : vector<1x128xf32>
      %25 = vector.shape_cast %24 : vector<1x128xf32> to vector<1x1x128xf32>
      %26 = arith.truncf %25 : vector<1x1x128xf32> to vector<1x1x128xbf16>
      %c0_19 = arith.constant 0 : index
      %c0_20 = arith.constant 0 : index
      %c0_21 = arith.constant 0 : index
      %27 = vector.load %arg5[%c0_19, %c0_20, %c0_21] : memref<1x1x128xbf16, #tpu.memory_space<vmem>>, vector<1x1x128xbf16>
      tpu.vector_store %arg5[%c0_19, %c0_20, %c0_21], %26 {strides = array<i32>} : memref<1x1x128xbf16, #tpu.memory_space<vmem>>, vector<1x1x128xbf16>,
    } else {
    }
    return
  }
  func.func @transform_0(%arg0: i32, %arg1: i32) -> (i32, i32, i32) {
    %c0_i32 = arith.constant 0 : i32
    %c0_i32_0 = arith.constant 0 : i32
    return %arg0, %arg1, %c0_i32 : i32, i32, i32
  }
  func.func @transform_1(%arg0: i32, %arg1: i32) -> (i32, i32) {
    %c0_i32 = arith.constant 0 : i32
    %c0_i32_0 = arith.constant 0 : i32
    %c0_i32_1 = arith.constant 0 : i32
    return %c0_i32, %c0_i32_0 : i32, i32
  }
  func.func @transform_2(%arg0: i32, %arg1: i32) -> (i32, i32) {
    %c0_i32 = arith.constant 0 : i32
    %c0_i32_0 = arith.constant 0 : i32
    %c0_i32_1 = arith.constant 0 : i32
    return %c0_i32, %c0_i32_0 : i32, i32
  }
  func.func @transform_3(%arg0: i32, %arg1: i32) -> (i32, i32, i32) {
    %c0_i32 = arith.constant 0 : i32
    %c0_i32_0 = arith.constant 0 : i32
    %c0_i32_1 = arith.constant 0 : i32
    return %arg0, %c0_i32, %c0_i32_0 : i32, i32, i32
  }
}

</mosaic_0001>

<llo_original>
// kernel: tpu_custom_call.1
$region0: #{tpu_custom_call.1}
  #allocation0 [shape = 'u32[]', space=smem, size = 0x4, offset = 0x4, fixed_abs, tag = 'smem constant byte address 0x4 - core index']
  #allocation1 [shape = 'u32[144,128]{1,0:T(1,128)}', space=vmem, size = 0x12000, scoped, tag = 'internal scratch']
  #allocation2 [shape = 'f32[8,128]{1,0:T(8,128)}', space=vmem, size = 0x1000, scoped, tag = 'scratch operand']
  %s0 = inlined_call_operand.vmem [shape: bf16[2,256,36], index: 0, kind: input, shape index: {}]
  %s1 = inlined_call_operand.vmem [shape: bf16[36,128], index: 1, kind: input, shape index: {}]
  %s2 = inlined_call_operand.vmem [shape: f32[1,128], index: 2, kind: input, shape index: {}]
  %s3 = inlined_call_operand.vmem [shape: bf16[2,1,128], index: 3, kind: output, shape index: {}]
  %s4 = sld [smem:[#allocation0]]
  $region53: #{tpu_custom_call.1} parent=0
    _
  %s6 = ssub.s32 1, %s4
  %s7 = scalar_select 0, %s6, %s4
  loop: start=0, step=1, limit=4
  $region2: #{tpu_custom_call.1} parent=0 // loop_pre_header
    _
  $region3: #{tpu_custom_call.1} parent=0 // loop_header
    %s9 = sphi 0, %s13
    %p10 = scmp.ge.s32.totalorder %s9, 4
    %s16 = sphi 0, %s28
    %s17 = sphi 0, %s24
    %s18 = sphi 0, %s16
    %s19 = sphi 0, %s17
    %s20 = sphi 0, %s18
    %s21 = sphi 0, %s19
    %s33 = sphi 0, %s35
    %s36 = sphi 0, %s33
    %s37 = sphi 0, %s36
    %s53 = sphi 0, %s37
    %s57 = sphi 0, %s57
    %s59 = sphi 0, %s57
    %s60 = sphi 0, %s59
    %s74 = sphi 0, %s60
    %s78 = sphi 0, %s78
    %s80 = sphi 0, %s78
    %s81 = sphi 0, %s80
    %s95 = sphi 0, %s81
    %s101 = sphi 0, %s103
    %s104 = sphi 0, %s101
    %s105 = sphi 0, %s104
    %s121 = sphi 0, %s105
  $region4: #{tpu_custom_call.1} parent=0 // loop_header_branch
    %12 = sbr.rel (%p10) target = $region8
  $region5: #{tpu_custom_call.1} parent=0 // loop_body
    %s14 = ssub.s32 %s9, 1
    %s15 = ssub.s32 %s9, 2
    %s22 = sadd.s32 1, %s17
    %p23 = scmp.ge.s32.totalorder %s22, 1
    %s24 = scalar_select %p23, 0, %s22
    %s25 = sadd.s32 1, %s16
    %s26 = scalar_select %p23, %s25, %s16
    %p27 = scmp.ge.s32.totalorder %s26, 2
    %s28 = scalar_select %p27, 0, %s26
    %s29 = ssub.s32 %s16, %s28
    %s30 = ssub.s32 %s17, %s24
    %s31 = sor.u32 %s29, %s30
    %p32 = scmp.eq.s32.totalorder %s31, 0
    %s34 = sadd.s32 %s33, 1
    %s35 = scalar_select %p32, %s33, %s34
    %p38 = pneg %p32
    %p39 = scmp.eq.s32.totalorder %s9, 1
    %p40 = por %p38, %p39
    %p41 = scmp.ne.s32.totalorder %s33, %s36
    %p42 = scmp.eq.s32.totalorder %s9, 0
    %p43 = por %p41, %p42
    %p44 = scmp.ne.s32.totalorder %s33, %s36
    %p45 = scmp.eq.s32.totalorder %s14, 1
    %p46 = por %p44, %p45
    %p47 = scmp.ne.s32.totalorder %s36, %s37
    %p48 = scmp.eq.s32.totalorder %s14, 0
    %p49 = por %p47, %p48
    %p50 = scmp.ne.s32.totalorder %s36, %s37
    %p51 = scmp.eq.s32.totalorder %s15, 1
    %p52 = por %p50, %p51
    %p54 = scmp.ne.s32.totalorder %s37, %s53
    %p55 = scmp.eq.s32.totalorder %s15, 0
    %p56 = por %p54, %p55
    %s58 = sadd.s32 %s57, 1
    %p61 = scmp.eq.s32.totalorder %s9, 1
    %p62 = scmp.ne.s32.totalorder %s57, %s59
    %p63 = scmp.eq.s32.totalorder %s9, 0
    %p64 = por %p62, %p63
    %p65 = scmp.ne.s32.totalorder %s57, %s59
    %p66 = scmp.eq.s32.totalorder %s14, 1
    %p67 = por %p65, %p66
    %p68 = scmp.ne.s32.totalorder %s59, %s60
    %p69 = scmp.eq.s32.totalorder %s14, 0
    %p70 = por %p68, %p69
    %p71 = scmp.ne.s32.totalorder %s59, %s60
    %p72 = scmp.eq.s32.totalorder %s15, 1
    %p73 = por %p71, %p72
    %p75 = scmp.ne.s32.totalorder %s60, %s74
    %p76 = scmp.eq.s32.totalorder %s15, 0
    %p77 = por %p75, %p76
    %s79 = sadd.s32 %s78, 1
    %p82 = scmp.eq.s32.totalorder %s9, 1
    %p83 = scmp.ne.s32.totalorder %s78, %s80
    %p84 = scmp.eq.s32.totalorder %s9, 0
    %p85 = por %p83, %p84
    %p86 = scmp.ne.s32.totalorder %s78, %s80
    %p87 = scmp.eq.s32.totalorder %s14, 1
    %p88 = por %p86, %p87
    %p89 = scmp.ne.s32.totalorder %s80, %s81
    %p90 = scmp.eq.s32.totalorder %s14, 0
    %p91 = por %p89, %p90
    %p92 = scmp.ne.s32.totalorder %s80, %s81
    %p93 = scmp.eq.s32.totalorder %s15, 1
    %p94 = por %p92, %p93
    %p96 = scmp.ne.s32.totalorder %s81, %s95
    %p97 = scmp.eq.s32.totalorder %s15, 0
    %p98 = por %p96, %p97
    %s99 = ssub.s32 %s16, %s28
    %p100 = scmp.eq.s32.totalorder %s99, 0
    %s102 = sadd.s32 %s101, 1
    %s103 = scalar_select %p100, %s101, %s102
    %p106 = pneg %p100
    %p107 = scmp.eq.s32.totalorder %s9, 1
    %p108 = por %p106, %p107
    %p109 = scmp.ne.s32.totalorder %s101, %s104
    %p110 = scmp.eq.s32.totalorder %s9, 0
    %p111 = por %p109, %p110
    %p112 = scmp.ne.s32.totalorder %s101, %s104
    %p113 = scmp.eq.s32.totalorder %s14, 1
    %p114 = por %p112, %p113
    %p115 = scmp.ne.s32.totalorder %s104, %s105
    %p116 = scmp.eq.s32.totalorder %s14, 0
    %p117 = por %p115, %p116
    %p118 = scmp.ne.s32.totalorder %s104, %s105
    %p119 = scmp.eq.s32.totalorder %s15, 1
    %p120 = por %p118, %p119
    %p122 = scmp.ne.s32.totalorder %s105, %s121
    %p123 = scmp.eq.s32.totalorder %s15, 0
    %p124 = por %p122, %p123
    %p125 = scmp.le.s32.totalorder 1, %s9
    %p126 = scmp.lt.s32.totalorder %s9, 3
    %p127 = pnand %p125, %p126
    %p128 = pneg %p127
    // Predicated region
    $region9: #{tpu_custom_call.1} parent=5 // pred_check
      _
    $region10: #{tpu_custom_call.1} parent=5 // pred_check_branch
      %130 = sbr.rel (%p127) target = $region12
    $region11: #{tpu_custom_call.1} parent=5 // pred_region
      %s131 = ssub.s32 %s9, 1
      // Predicated region
      $region13: #{tpu_custom_call.1} parent=11 // pred_check
        %p132 = pneg %p70
      $region14: #{tpu_custom_call.1} parent=11 // pred_check_branch
        %134 = sbr.rel (%p132) target = $region16
      $region15: #{tpu_custom_call.1} parent=11 // pred_region
        _
      $region16: #{tpu_custom_call.1} parent=11 // pred_fallthru
        _
      // Predicated region
      $region17: #{tpu_custom_call.1} parent=11 // pred_check
        %p135 = pneg %p91
      $region18: #{tpu_custom_call.1} parent=11 // pred_check_branch
        %137 = sbr.rel (%p135) target = $region20
      $region19: #{tpu_custom_call.1} parent=11 // pred_region
        _
      $region20: #{tpu_custom_call.1} parent=11 // pred_fallthru
        _
    $region12: #{tpu_custom_call.1} parent=5 // pred_fallthru
      _
    %p138 = scmp.lt.s32.totalorder %s9, 2
    // Predicated region
    $region21: #{tpu_custom_call.1} parent=5 // pred_check
      %p139 = pneg %p138
    $region22: #{tpu_custom_call.1} parent=5 // pred_check_branch
      %141 = sbr.rel (%p139) target = $region24
    $region23: #{tpu_custom_call.1} parent=5 // pred_region
      // Predicated region
      $region25: #{tpu_custom_call.1} parent=23 // pred_check
        %p142 = pneg %p43
      $region26: #{tpu_custom_call.1} parent=23 // pred_check_branch
        %144 = sbr.rel (%p142) target = $region28
      $region27: #{tpu_custom_call.1} parent=23 // pred_region
        %s145 = smul.u32 32, %s17
        %p146 = scmp.lt.s32.totalorder %s16, 1
        %s147 = scalar_select %p146, %s16, 1
        %p148 = scmp.lt.s32.totalorder %s145, 31
        %s149 = scalar_select %p148, %s145, 31
        %s150 = smul.addr %s147, 32
        %s151 = sadd.s32 %s149, %s150
        %s152 = smul.addr %s151, 4
        %s153 = scalar_lea.vmem %s0, %s152
        %s154 = smul.u32 32, %s17
      $region28: #{tpu_custom_call.1} parent=23 // pred_fallthru
        _
    $region24: #{tpu_custom_call.1} parent=5 // pred_fallthru
      _
    %p155 = scmp.le.s32.totalorder 1, %s9
    %p156 = scmp.lt.s32.totalorder %s9, 3
    %p157 = pnand %p155, %p156
    %p158 = pneg %p157
    // Predicated region
    $region29: #{tpu_custom_call.1} parent=5 // pred_check
      _
    $region30: #{tpu_custom_call.1} parent=5 // pred_check_branch
      %160 = sbr.rel (%p157) target = $region32
    $region31: #{tpu_custom_call.1} parent=5 // pred_region
      %s161 = ssub.s32 %s9, 1
      %s162 = smul.u32 32, %s19
      %p163 = scmp.lt.s32.totalorder %s18, 1
      %s164 = scalar_select %p163, %s18, 1
      %p165 = scmp.lt.s32.totalorder %s162, 31
      %s166 = scalar_select %p165, %s162, 31
      %s167 = smul.addr %s164, 32
      %s168 = sadd.s32 %s166, %s167
      %s169 = smul.addr %s168, 4
      %s170 = scalar_lea.vmem %s0, %s169
      %p171 = pneg %p49
      %p172 = pneg %p46
      %p173 = pneg %p70
      %p174 = pneg %p67
      %p175 = pneg %p91
      %p176 = pneg %p88
      %p177 = pneg %p117
      %p178 = pneg %p114
      %p179 = scmp.lt.s32.totalorder %s18, 1
      %s180 = scalar_select %p179, %s18, 1
      %s181 = scalar_lea.vmem %s3, %s180
      %s182 = smul.u32 32, %s19
      %p183 = scmp.lt.s32.totalorder %s18, 1
      %s184 = scalar_select %p183, %s18, 1
      %p185 = scmp.lt.s32.totalorder %s182, 31
      %s186 = scalar_select %p185, %s182, 31
      %s187 = smul.addr %s184, 32
      %s188 = sadd.s32 %s186, %s187
      %s189 = smul.addr %s188, 4
      %s190 = scalar_lea.vmem %s0, %s189
      %s191 = smul.u32 32, %s19
      %p192 = scmp.lt.s32.totalorder %s18, 1
      %s193 = scalar_select %p192, %s18, 1
      %s194 = scalar_lea.vmem %s3, %s193
      %p196 = scmp.eq.s32.totalorder %s19, 0
      // Predicated region
      $region33: #{tpu_custom_call.1} parent=31 // pred_check
        %p197 = pneg %p196
      $region34: #{tpu_custom_call.1} parent=31 // pred_check_branch
        %199 = sbr.rel (%p197) target = $region36
      $region35: #{tpu_custom_call.1} parent=31 // pred_region
        %200 = vst [vmem:[#allocation2] sm:$0xff] 0.0
      $region36: #{tpu_custom_call.1} parent=31 // pred_fallthru
        _
      %v201 = vld [vmem:[%s190] sm:$0xf]
      %v202 = vld [vmem:[%s190 + $0x4] sm:$0xf]
      %v203 = vld [vmem:[%s190 + $0x8] sm:$0xf]
      %v204 = vld [vmem:[%s190 + $0xc] sm:$0xf]
      %v205 = vld [vmem:[%s190 + $0x10] sm:$0xf]
      %v206 = vld [vmem:[%s190 + $0x14] sm:$0xf]
      %v207 = vld [vmem:[%s190 + $0x18] sm:$0xf]
      %v208 = vld [vmem:[%s190 + $0x1c] sm:$0xf]
      %v209 = vld [vmem:[%s190 + $0x20] sm:$0xf]
      %v210 = vld [vmem:[%s190 + $0x24] sm:$0xf]
      %v211 = vld [vmem:[%s190 + $0x28] sm:$0xf]
      %v212 = vld [vmem:[%s190 + $0x2c] sm:$0xf]
      %v213 = vld [vmem:[%s190 + $0x30] sm:$0xf]
      %v214 = vld [vmem:[%s190 + $0x34] sm:$0xf]
      %v215 = vld [vmem:[%s190 + $0x38] sm:$0xf]
      %v216 = vld [vmem:[%s190 + $0x3c] sm:$0xf]
      %v217 = vld [vmem:[%s190 + $0x40] sm:$0xf]
      %v218 = vld [vmem:[%s190 + $0x44] sm:$0xf]
      %v219 = vld [vmem:[%s190 + $0x48] sm:$0xf]
      %v220 = vld [vmem:[%s190 + $0x4c] sm:$0xf]
      %v221 = vld [vmem:[%s190 + $0x50] sm:$0xf]
      %v222 = vld [vmem:[%s190 + $0x54] sm:$0xf]
      %v223 = vld [vmem:[%s190 + $0x58] sm:$0xf]
      %v224 = vld [vmem:[%s190 + $0x5c] sm:$0xf]
      %v225 = vld [vmem:[%s190 + $0x60] sm:$0xf]
      %v226 = vld [vmem:[%s190 + $0x64] sm:$0xf]
      %v227 = vld [vmem:[%s190 + $0x68] sm:$0xf]
      %v228 = vld [vmem:[%s190 + $0x6c] sm:$0xf]
      %v229 = vld [vmem:[%s190 + $0x70] sm:$0xf]
      %v230 = vld [vmem:[%s190 + $0x74] sm:$0xf]
      %v231 = vld [vmem:[%s190 + $0x78] sm:$0xf]
      %v232 = vld [vmem:[%s190 + $0x7c] sm:$0xf]
      %v233 = vld [vmem:[%s1] sm:$0xf]
      %v234 = vld [vmem:[%s1 + $0x4] sm:$0xf]
      %v235 = vld [vmem:[%s1 + $0x8] sm:$0xf]
      %v236 = vld [vmem:[%s1 + $0xc] sm:$0xf]
      %v237 = vld [vmem:[%s1 + $0x10] sm:$0x3]
      %v238 = vld [vmem:[%s2] sm:$0x1]
      %v240 = vlaneseq
      %v241 = vshrl.u32 %v240, 7
      %v242 = vsub.s32 0, %v241
      %v243 = vrot.slane %v238, %v242
      %v277 = vunpack.c.l.b16 %v201
      %v278 = vunpack.c.l.b16 %v202
      %v279 = vunpack.c.l.b16 %v203
      %v280 = vunpack.c.l.b16 %v204
      %v281 = vunpack.c.l.b16 %v205
      %v282 = vunpack.c.l.b16 %v206
      %v283 = vunpack.c.l.b16 %v207
      %v284 = vunpack.c.l.b16 %v208
      %v285 = vunpack.c.l.b16 %v209
      %v286 = vunpack.c.l.b16 %v210
      %v287 = vunpack.c.l.b16 %v211
      %v288 = vunpack.c.l.b16 %v212
      %v289 = vunpack.c.l.b16 %v213
      %v290 = vunpack.c.l.b16 %v214
      %v291 = vunpack.c.l.b16 %v215
      %v292 = vunpack.c.l.b16 %v216
      %v293 = vunpack.c.l.b16 %v217
      %v294 = vunpack.c.l.b16 %v218
      %v295 = vunpack.c.l.b16 %v219
      %v296 = vunpack.c.l.b16 %v220
      %v297 = vunpack.c.l.b16 %v221
      %v298 = vunpack.c.l.b16 %v222
      %v299 = vunpack.c.l.b16 %v223
      %v300 = vunpack.c.l.b16 %v224
      %v301 = vunpack.c.l.b16 %v225
      %v302 = vunpack.c.l.b16 %v226
      %v303 = vunpack.c.l.b16 %v227
      %v304 = vunpack.c.l.b16 %v228
      %v305 = vunpack.c.l.b16 %v229
      %v306 = vunpack.c.l.b16 %v230
      %v307 = vunpack.c.l.b16 %v231
      %v308 = vunpack.c.l.b16 %v232
      %v309 = vpack.c.b16 %v278, %v277
      %v310 = vpack.c.b16 %v280, %v279
      %v311 = vpack.c.b16 %v282, %v281
      %v312 = vpack.c.b16 %v284, %v283
      %v313 = vpack.c.b16 %v286, %v285
      %v314 = vpack.c.b16 %v288, %v287
      %v315 = vpack.c.b16 %v290, %v289
      %v316 = vpack.c.b16 %v292, %v291
      %v317 = vpack.c.b16 %v294, %v293
      %v318 = vpack.c.b16 %v296, %v295
      %v319 = vpack.c.b16 %v298, %v297
      %v320 = vpack.c.b16 %v300, %v299
      %v321 = vpack.c.b16 %v302, %v301
      %v322 = vpack.c.b16 %v304, %v303
      %v323 = vpack.c.b16 %v306, %v305
      %v324 = vpack.c.b16 %v308, %v307
      %v330 = vunpack.c.l.b16 %v233
      %v331 = vunpack.c.l.b16 %v234
      %v332 = vunpack.c.l.b16 %v235
      %v333 = vunpack.c.l.b16 %v236
      %v334 = vunpack.c.l.b16 %v237
      %v335 = vpack.c.b16 %v331, %v330
      %v336 = vpack.c.b16 %v333, %v332
      %v337 = vpack.c.b16 %v334, %v334
      %vm340 = vcmask 293888
      %v342 = vsel %vm340, %v309, 0
      %v345 = vsel %vm340, %v310, 0
      %v348 = vsel %vm340, %v311, 0
      %v351 = vsel %vm340, %v312, 0
      %v354 = vsel %vm340, %v313, 0
      %v357 = vsel %vm340, %v314, 0
      %v360 = vsel %vm340, %v315, 0
      %v363 = vsel %vm340, %v316, 0
      %v366 = vsel %vm340, %v317, 0
      %v369 = vsel %vm340, %v318, 0
      %v372 = vsel %vm340, %v319, 0
      %v375 = vsel %vm340, %v320, 0
      %v378 = vsel %vm340, %v321, 0
      %v381 = vsel %vm340, %v322, 0
      %v384 = vsel %vm340, %v323, 0
      %v387 = vsel %vm340, %v324, 0
      %vm389 = vcmask 1041408
      %v391 = vsel %vm389, %v337, 0
      %393 = vmatprep.subr.bf16.mxu0 0
      %394 = vmatpush1.bf16.msra.mxu0 0
      %395 = vmatprep.subr.bf16.mxu0 0
      %396 = vmatpush1.bf16.msra.mxu0 0
      %397 = vmatprep.subr.bf16.mxu0 0
      %398 = vmatpush1.bf16.msra.mxu0 0
      %399 = vmatprep.subr.bf16.mxu0 0
      %400 = vmatpush1.bf16.msra.mxu0 0
      %401 = vmatprep.subr.bf16.mxu0 0
      %402 = vmatpush1.bf16.msra.mxu0 0
      %403 = vmatprep.subr.bf16.mxu0 0
      %404 = vmatpush1.bf16.msra.mxu0 %v391
      %405 = vmatprep.subr.bf16.mxu0 0
      %406 = vmatpush1.bf16.msra.mxu0 %v336
      %407 = vmatprep.subr.bf16.mxu0 0
      %408 = vmatpush1.bf16.msra.mxu0 %v335
      %409 = vmatprep.subr.bf16.mxu0 0
      %410 = vmatpush2.bf16.msra.mxu0 0
      %411 = vmatprep.subr.bf16.mxu0 0
      %412 = vmatpush2.bf16.msra.mxu0 0
      %413 = vmatprep.subr.bf16.mxu0 0
      %414 = vmatpush2.bf16.msra.mxu0 0
      %415 = vmatprep.subr.bf16.mxu0 0
      %416 = vmatpush2.bf16.msra.mxu0 0
      %417 = vmatprep.subr.bf16.mxu0 0
      %418 = vmatpush2.bf16.msra.mxu0 0
      %419 = vmatprep.subr.bf16.mxu0 0
      %420 = vmatpush2.bf16.msra.mxu0 0
      %421 = vmatprep.subr.bf16.mxu0 0
      %422 = vmatpush2.bf16.msra.mxu0 0
      %423 = vmatprep.subr.bf16.mxu0 0
      %424 = vmatpush2.bf16.msra.mxu0 0
      %425 = vmatprep.mubr.bf16.mxu0 0
      %426 = vmatmul.mubr.bf16.gmra.mxu0 %v342
      %v427 = vpop.f32.mrf.mxu0
      %v428 = vadd.f32 %v243, %v427
      %v429 = vpop.f32.mrf.mxu0
      %v430 = vpop.f32.mrf.mxu0
      %v431 = vadd.f32 %v243, %v430
      %v432 = vpop.f32.mrf.mxu0
      %433 = vmatprep.mubr.bf16.mxu0 0
      %434 = vmatmul.mubr.bf16.gmra.mxu0 %v345
      %v435 = vpop.f32.mrf.mxu0
      %v436 = vadd.f32 %v243, %v435
      %v437 = vpop.f32.mrf.mxu0
      %v438 = vpop.f32.mrf.mxu0
      %v439 = vadd.f32 %v243, %v438
      %v440 = vpop.f32.mrf.mxu0
      %441 = vmatprep.mubr.bf16.mxu0 0
      %442 = vmatmul.mubr.bf16.gmra.mxu0 %v348
      %v443 = vpop.f32.mrf.mxu0
      %v444 = vadd.f32 %v243, %v443
      %v445 = vpop.f32.mrf.mxu0
      %v446 = vpop.f32.mrf.mxu0
      %v447 = vadd.f32 %v243, %v446
      %v448 = vpop.f32.mrf.mxu0
      %449 = vmatprep.mubr.bf16.mxu0 0
      %450 = vmatmul.mubr.bf16.gmra.mxu0 %v351
      %v451 = vpop.f32.mrf.mxu0
      %v452 = vadd.f32 %v243, %v451
      %v453 = vpop.f32.mrf.mxu0
      %v454 = vpop.f32.mrf.mxu0
      %v455 = vadd.f32 %v243, %v454
      %v456 = vpop.f32.mrf.mxu0
      %457 = vmatprep.mubr.bf16.mxu0 0
      %458 = vmatmul.mubr.bf16.gmra.mxu0 %v354
      %v459 = vpop.f32.mrf.mxu0
      %v460 = vadd.f32 %v243, %v459
      %v461 = vpop.f32.mrf.mxu0
      %v462 = vpop.f32.mrf.mxu0
      %v463 = vadd.f32 %v243, %v462
      %v464 = vpop.f32.mrf.mxu0
      %465 = vmatprep.mubr.bf16.mxu0 0
      %466 = vmatmul.mubr.bf16.gmra.mxu0 %v357
      %v467 = vpop.f32.mrf.mxu0
      %v468 = vadd.f32 %v243, %v467
      %v469 = vpop.f32.mrf.mxu0
      %v470 = vpop.f32.mrf.mxu0
      %v471 = vadd.f32 %v243, %v470
      %v472 = vpop.f32.mrf.mxu0
      %473 = vmatprep.mubr.bf16.mxu0 0
      %474 = vmatmul.mubr.bf16.gmra.mxu0 %v360
      %v475 = vpop.f32.mrf.mxu0
      %v476 = vadd.f32 %v243, %v475
      %v477 = vpop.f32.mrf.mxu0
      %v478 = vpop.f32.mrf.mxu0
      %v479 = vadd.f32 %v243, %v478
      %v480 = vpop.f32.mrf.mxu0
      %481 = vmatprep.mubr.bf16.mxu0 0
      %482 = vmatmul.mubr.bf16.gmra.mxu0 %v363
      %v483 = vpop.f32.mrf.mxu0
      %v484 = vadd.f32 %v243, %v483
      %v485 = vpop.f32.mrf.mxu0
      %v486 = vpop.f32.mrf.mxu0
      %v487 = vadd.f32 %v243, %v486
      %v488 = vpop.f32.mrf.mxu0
      %489 = vmatprep.mubr.bf16.mxu0 0
      %490 = vmatmul.mubr.bf16.gmra.mxu0 %v366
      %v491 = vpop.f32.mrf.mxu0
      %v492 = vadd.f32 %v243, %v491
      %v493 = vpop.f32.mrf.mxu0
      %v494 = vpop.f32.mrf.mxu0
      %v495 = vadd.f32 %v243, %v494
      %v496 = vpop.f32.mrf.mxu0
      %497 = vmatprep.mubr.bf16.mxu0 0
      %498 = vmatmul.mubr.bf16.gmra.mxu0 %v369
      %v499 = vpop.f32.mrf.mxu0
      %v500 = vadd.f32 %v243, %v499
      %v501 = vpop.f32.mrf.mxu0
      %v502 = vpop.f32.mrf.mxu0
      %v503 = vadd.f32 %v243, %v502
      %v504 = vpop.f32.mrf.mxu0
      %505 = vmatprep.mubr.bf16.mxu0 0
      %506 = vmatmul.mubr.bf16.gmra.mxu0 %v372
      %v507 = vpop.f32.mrf.mxu0
      %v508 = vadd.f32 %v243, %v507
      %v509 = vpop.f32.mrf.mxu0
      %v510 = vpop.f32.mrf.mxu0
      %v511 = vadd.f32 %v243, %v510
      %v512 = vpop.f32.mrf.mxu0
      %513 = vmatprep.mubr.bf16.mxu0 0
      %514 = vmatmul.mubr.bf16.gmra.mxu0 %v375
      %v515 = vpop.f32.mrf.mxu0
      %v516 = vadd.f32 %v243, %v515
      %v517 = vpop.f32.mrf.mxu0
      %v518 = vpop.f32.mrf.mxu0
      %v519 = vadd.f32 %v243, %v518
      %v520 = vpop.f32.mrf.mxu0
      %521 = vmatprep.mubr.bf16.mxu0 0
      %522 = vmatmul.mubr.bf16.gmra.mxu0 %v378
      %v523 = vpop.f32.mrf.mxu0
      %v524 = vadd.f32 %v243, %v523
      %v525 = vpop.f32.mrf.mxu0
      %v526 = vpop.f32.mrf.mxu0
      %v527 = vadd.f32 %v243, %v526
      %v528 = vpop.f32.mrf.mxu0
      %529 = vmatprep.mubr.bf16.mxu0 0
      %530 = vmatmul.mubr.bf16.gmra.mxu0 %v381
      %v531 = vpop.f32.mrf.mxu0
      %v532 = vadd.f32 %v243, %v531
      %v533 = vpop.f32.mrf.mxu0
      %v534 = vpop.f32.mrf.mxu0
      %v535 = vadd.f32 %v243, %v534
      %v536 = vpop.f32.mrf.mxu0
      %537 = vmatprep.mubr.bf16.mxu0 0
      %538 = vmatmul.mubr.bf16.gmra.mxu0 %v384
      %v539 = vpop.f32.mrf.mxu0
      %v540 = vadd.f32 %v243, %v539
      %v541 = vpop.f32.mrf.mxu0
      %v542 = vpop.f32.mrf.mxu0
      %v543 = vadd.f32 %v243, %v542
      %v544 = vpop.f32.mrf.mxu0
      %545 = vmatprep.mubr.bf16.mxu0 0
      %546 = vmatmul.mubr.bf16.gmra.mxu0 %v387
      %v547 = vpop.f32.mrf.mxu0
      %v548 = vadd.f32 %v243, %v547
      %v549 = vpop.f32.mrf.mxu0
      %v550 = vpop.f32.mrf.mxu0
      %v551 = vadd.f32 %v243, %v550
      %v552 = vpop.f32.mrf.mxu0
      %553 = vdwg.mxu0
      %v554 = vmax.f32 %v428, 0.0
      %v555 = vmax.f32 %v431, 0.0
      %v556 = vmax.f32 %v436, 0.0
      %v557 = vmax.f32 %v439, 0.0
      %v558 = vmax.f32 %v444, 0.0
      %v559 = vmax.f32 %v447, 0.0
      %v560 = vmax.f32 %v452, 0.0
      %v561 = vmax.f32 %v455, 0.0
      %v562 = vmax.f32 %v460, 0.0
      %v563 = vmax.f32 %v463, 0.0
      %v564 = vmax.f32 %v468, 0.0
      %v565 = vmax.f32 %v471, 0.0
      %v566 = vmax.f32 %v476, 0.0
      %v567 = vmax.f32 %v479, 0.0
      %v568 = vmax.f32 %v484, 0.0
      %v569 = vmax.f32 %v487, 0.0
      %v570 = vmax.f32 %v492, 0.0
      %v571 = vmax.f32 %v495, 0.0
      %v572 = vmax.f32 %v500, 0.0
      %v573 = vmax.f32 %v503, 0.0
      %v574 = vmax.f32 %v508, 0.0
      %v575 = vmax.f32 %v511, 0.0
      %v576 = vmax.f32 %v516, 0.0
      %v577 = vmax.f32 %v519, 0.0
      %v578 = vmax.f32 %v524, 0.0
      %v579 = vmax.f32 %v527, 0.0
      %v580 = vmax.f32 %v532, 0.0
      %v581 = vmax.f32 %v535, 0.0
      %v582 = vmax.f32 %v540, 0.0
      %v583 = vmax.f32 %v543, 0.0
      %v584 = vmax.f32 %v548, 0.0
      %v585 = vmax.f32 %v551, 0.0
      %v586 = vld [vmem:[#allocation2] sm:$0xff]
      %v587 = vadd.f32 %v554, %v555
      %v588 = vadd.f32 %v587, %v556
      %v589 = vadd.f32 %v588, %v557
      %v590 = vadd.f32 %v589, %v558
      %v591 = vadd.f32 %v590, %v559
      %v592 = vadd.f32 %v591, %v560
      %v593 = vadd.f32 %v592, %v561
      %v594 = vadd.f32 %v593, %v562
      %v595 = vadd.f32 %v594, %v563
      %v596 = vadd.f32 %v595, %v564
      %v597 = vadd.f32 %v596, %v565
      %v598 = vadd.f32 %v597, %v566
      %v599 = vadd.f32 %v598, %v567
      %v600 = vadd.f32 %v599, %v568
      %v601 = vadd.f32 %v600, %v569
      %v602 = vadd.f32 %v601, %v570
      %v603 = vadd.f32 %v602, %v571
      %v604 = vadd.f32 %v603, %v572
      %v605 = vadd.f32 %v604, %v573
      %v606 = vadd.f32 %v605, %v574
      %v607 = vadd.f32 %v606, %v575
      %v608 = vadd.f32 %v607, %v576
      %v609 = vadd.f32 %v608, %v577
      %v610 = vadd.f32 %v609, %v578
      %v611 = vadd.f32 %v610, %v579
      %v612 = vadd.f32 %v611, %v580
      %v613 = vadd.f32 %v612, %v581
      %v614 = vadd.f32 %v613, %v582
      %v615 = vadd.f32 %v614, %v583
      %v616 = vadd.f32 %v615, %v584
      %v617 = vadd.f32 %v616, %v585
      %v618 = vadd.f32 %v586, %v617
      %619 = vst [vmem:[#allocation2] sm:$0xff] %v618
      // Predicated region
      $region37: #{tpu_custom_call.1} parent=31 // pred_check
        %p620 = pneg %p196
      $region38: #{tpu_custom_call.1} parent=31 // pred_check_branch
        %622 = sbr.rel (%p620) target = $region40
      $region39: #{tpu_custom_call.1} parent=31 // pred_region
        %v623 = vld [vmem:[#allocation2] sm:$0xff]
        %v624 = vrot.slane %v623, 4
        %v625 = vadd.f32 %v623, %v624
        %v626 = vrot.slane %v625, 2
        %v627 = vadd.f32 %v625, %v626
        %v628 = vrot.slane %v627, 1
        %v629 = vadd.f32 %v627, %v628
        %v630 = vmul.f32 %v629, 0.00390625
        %v631 = vpack.c.bf16 %v630, %v630
        %vm632 = vcmask 1040384
        %vm633 = vsmask.f32 256
        %vm634 = vmand %vm632, %vm633
        %v635 = vld [vmem:[%s194] sm:$0x1]
        %v636 = vsel %vm634, %v631, %v635
        %637 = vst [vmem:[%s194] sm:$0x1] %v636
      $region40: #{tpu_custom_call.1} parent=31 // pred_fallthru
        _
      %p638 = scmp.lt.s32.totalorder %s18, 1
      %s639 = scalar_select %p638, %s18, 1
      %s640 = scalar_lea.vmem %s3, %s639
      // Predicated region
      $region41: #{tpu_custom_call.1} parent=31 // pred_check
        %p641 = pneg %p114
      $region42: #{tpu_custom_call.1} parent=31 // pred_check_branch
        %643 = sbr.rel (%p641) target = $region44
      $region43: #{tpu_custom_call.1} parent=31 // pred_region
        _
      $region44: #{tpu_custom_call.1} parent=31 // pred_fallthru
        _
    $region32: #{tpu_custom_call.1} parent=5 // pred_fallthru
      _
    %p644 = scmp.le.s32.totalorder 2, %s9
    // Predicated region
    $region45: #{tpu_custom_call.1} parent=5 // pred_check
      %p645 = pneg %p644
    $region46: #{tpu_custom_call.1} parent=5 // pred_check_branch
      %647 = sbr.rel (%p645) target = $region48
    $region47: #{tpu_custom_call.1} parent=5 // pred_region
      %s648 = ssub.s32 %s9, 2
      // Predicated region
      $region49: #{tpu_custom_call.1} parent=47 // pred_check
        %p649 = pneg %p120
      $region50: #{tpu_custom_call.1} parent=47 // pred_check_branch
        %651 = sbr.rel (%p649) target = $region52
      $region51: #{tpu_custom_call.1} parent=47 // pred_region
        %p652 = scmp.lt.s32.totalorder %s20, 1
        %s653 = scalar_select %p652, %s20, 1
        %s654 = scalar_lea.vmem %s3, %s653
      $region52: #{tpu_custom_call.1} parent=47 // pred_fallthru
        _
    $region48: #{tpu_custom_call.1} parent=5 // pred_fallthru
      _
  $region6: #{tpu_custom_call.1} parent=0 // loop_footer
    %s13 = sadd.s32 1, %s9
  $region7: #{tpu_custom_call.1} parent=0 // loop_footer_branch
    %8 = sbr.rel target = $region3
  $region8: #{tpu_custom_call.1} parent=0 // loop_exit
    _

</llo_original>
